<compile_context>
chip_gen: v6e
topology: v6e:2x2x1
jax: 0.10.0
libtpu: 0.0.40
codegen_flags: <defaults>
</compile_context>

<pallas_src>
import functools
import math

import jax
import jax.numpy as jnp
from jax.experimental import pallas as pl
from jax.experimental.pallas import tpu as pltpu


# --------------------------- VMEM budget helpers ----------------------------

@functools.lru_cache(maxsize=1)
def _tpu_vmem_capacity_bytes():
    """Physical VMEM per TensorCore (128 MiB on v5e/v6e, 64 MiB on v7x)."""
    try:
        cap = getattr(pltpu.get_tpu_info(), "vmem_capacity_bytes", None)
        if cap:
            return int(cap)
    except Exception:
        pass
    return 64 << 20                      # conservative default (v7x per-TensorCore)


def _scoped_vmem_cap():
    """Generation-aware scoped-VMEM target, leaving headroom for Mosaic internals."""
    cap = _tpu_vmem_capacity_bytes()
    if cap >= (96 << 20):                # v5e / v6e: 128 MiB physical VMEM
        return 100 << 20
    # v7x: 64 MiB per TensorCore -> cap well below physical to avoid compile OOM.
    return max(32 << 20, min(48 << 20, cap - (12 << 20)))


def _vmem_limit(working_bytes):
    return int(min(max(working_bytes + (4 << 20), 32 << 20), _scoped_vmem_cap()))


def _pick_block(N):
    """Largest A tile that keeps zero-padding waste of the dense A under ~35%."""
    for blk in (2048, 1024, 512, 256, 128):
        n_pad = ((N + blk - 1) // blk) * blk
        if n_pad * n_pad <= 1.35 * N * N:
            return blk
    return 128


# ----------------------------- Pallas kernels ------------------------------

def _score_resident_kernel(h0_ref, a_ref, score_ref, *, K, alpha):
    """APPNP with the whole (bf16) propagation matrix resident in VMEM.

    h0_ref: [1, N] f32 VMEM, a_ref: [N, N] bf16 VMEM = (1 - alpha) * A_hat^T,
    score_ref: [1, N] f32 VMEM (lane-dense).
    """
    h0 = h0_ref[...]
    a = a_ref[...]
    ah0 = alpha * h0                      # hoisted out of the K loop
    h = h0
    for _ in range(K):                    # unrolled: one MXU mat-vec + one VPU add per step
        h = jnp.dot(h.astype(a.dtype), a, preferred_element_type=jnp.float32) + ah0
    score_ref[...] = h.astype(score_ref.dtype)


def _score_tiled_kernel(h0_ref, ah0_ref, a_ref, score_ref, acc_ref, h_pp_ref, *, K, nblk):
    """APPNP step k, contraction (row) block i, output column block j; grid=(K, i, j).

    h_{k+1}[j] = sum_i h_k[i] @ A_prop[i, j] + alpha * h0[j];
    h_k is carried across grid steps in a ping-pong VMEM scratch (half k % 2),
    seeded with h0 at k == 0. The output is a grid-resident block (written only at
    k == K-1), so there are no stale intermediate writebacks.
    """
    k = pl.program_id(0)
    i = pl.program_id(1)                  # contraction block (block of h_k / A row-block)
    j = pl.program_id(2)                  # output column block
    src = k % 2

    # Seed the k == 0 half of the ping-pong scratch with h0 (once per i block).
    @pl.when((k == 0) & (j == 0))
    def _():
        h_pp_ref[i] = h0_ref[...]

    # Fresh accumulator at the start of every contraction pass of step k.
    @pl.when((i == 0) & (j == 0))
    def _():
        acc_ref[...] = jnp.zeros_like(acc_ref)

    lhs = h_pp_ref[src * nblk + i]        # [1, blk] f32
    acc_ref[j] += jnp.dot(lhs.astype(a_ref.dtype), a_ref[0, 0],
                          preferred_element_type=jnp.float32)

    @pl.when(i == nblk - 1)
    def _():
        h_new = acc_ref[j] + ah0_ref[...]
        h_pp_ref[(1 - src) * nblk + j] = h_new

        @pl.when(k == K - 1)
        def _():
            score_ref[j] = h_new.astype(score_ref.dtype)


# ------------------------------ Pallas wrappers -----------------------------

def _linear_scores_row(x, w, b):
    """h0 = (x @ w + b)^T as a lane-dense [1, N] row (tiny matvec, left to XLA)."""
    xf = x.astype(jnp.float32)
    wf = w.astype(jnp.float32)
    return ((xf @ wf)[:, 0] + b.astype(jnp.float32)[0])[None, :]


def appnp_score_resident(x, w, b, a_prop, *, K, alpha):
    """Propagated scores, shape [N]. Whole bf16 a_prop stays resident in VMEM."""
    N, _ = x.shape
    h0 = _linear_scores_row(x, w, b)                  # [1, N] f32
    a_bf16 = a_prop.astype(jnp.bfloat16)              # halve bytes of A moved / held
    kernel = functools.partial(_score_resident_kernel, K=K, alpha=alpha)
    working = 2 * N * N + 12 * N
    score_row = pl.pallas_call(
        kernel,
        out_shape=jax.ShapeDtypeStruct((1, N), jnp.float32),
        in_specs=[
            pl.BlockSpec(memory_space=pltpu.MemorySpace.VMEM),   # h0
            pl.BlockSpec(memory_space=pltpu.MemorySpace.VMEM),   # a_prop (resident, bf16)
        ],
        out_specs=pl.BlockSpec(memory_space=pltpu.MemorySpace.VMEM),
        compiler_params=pltpu.CompilerParams(vmem_limit_bytes=_vmem_limit(working)),
        cost_estimate=pl.CostEstimate(
            flops=2 * K * N * N,
            transcendentals=0,
            bytes_accessed=2 * N * N + 8 * N),
    )(h0, a_bf16)
    return score_row[0]


def _a_tile_spec(blk, buffers):
    idx = lambda k, i, j: (i, j, 0, 0)
    if buffers > 2:
        try:
            return pl.BlockSpec((1, 1, blk, blk), idx, pipeline_mode=pl.Buffered(buffers))
        except TypeError:                 # older BlockSpec without pipeline_mode
            pass
    return pl.BlockSpec((1, 1, blk, blk), idx)


def appnp_score_tiled(x, w, b, a_prop, *, K, alpha, blk=None):
    """Propagated scores, shape [N], for graphs whose dense A does not fit in VMEM.

    bf16 A is streamed in contiguous (blk, blk) tiles (pre-tiled once in XLA), h stays
    in a VMEM ping-pong scratch. All grid axes are "arbitrary": h is carried in
    per-core scratch, so step k must finish before step k+1.
    # TODO(synk): shard the j axis across v7x's 2 TensorCores (leading parallel axis or
    #             pl.core_map), carrying h between k steps via HBM (~8*N bytes/step).
    # TODO(synk): for tile-sparse graphs, prefetch a compacted SMEM list of nonzero
    #             (i, j) tiles via PrefetchScalarGridSpec and skip zero tiles.
    """
    N, _ = x.shape
    h0 = _linear_scores_row(x, w, b)                  # [1, N] f32
    if K == 0:
        return h0[0]
    if blk is None:
        blk = _pick_block(N)
    nblk = (N + blk - 1) // blk
    n_pad = nblk * blk
    pad = n_pad - N

    a_bf16 = a_prop.astype(jnp.bfloat16)
    if pad:
        a_bf16 = jnp.pad(a_bf16, ((0, pad), (0, pad)))
        h0 = jnp.pad(h0, ((0, 0), (0, pad)))
    ah0 = alpha * h0
    # Pre-tile A once: [nblk, nblk, blk, blk] so every tile fetch is one contiguous DMA.
    a_tiles = a_bf16.reshape(nblk, blk, nblk, blk).transpose(0, 2, 1, 3)

    tile_bytes = blk * blk * 2
    fixed = 4 * (4 * n_pad + 8 * blk)                 # out + acc + h ping-pong + h0/ah0
    scoped = _scoped_vmem_cap()
    n_a_buf = 3 if (3 * tile_bytes + fixed + (6 << 20)) <= scoped else 2

    kernel = functools.partial(_score_tiled_kernel, K=K, nblk=nblk)
    out = pl.pallas_call(
        kernel,
        out_shape=jax.ShapeDtypeStruct((nblk, 1, blk), jnp.float32),
        grid=(K, nblk, nblk),
        in_specs=[
            pl.BlockSpec((1, blk), lambda k, i, j: (0, i)),     # h0 (k==0 seed blocks)
            pl.BlockSpec((1, blk), lambda k, i, j: (0, j)),     # alpha * h0
            _a_tile_spec(blk, n_a_buf),                         # A tiles (contiguous, bf16)
        ],
        out_specs=pl.BlockSpec((nblk, 1, blk), lambda k, i, j: (0, 0, 0)),  # resident
        scratch_shapes=[
            pltpu.VMEM((nblk, 1, blk), jnp.float32),            # full-width accumulator
            pltpu.VMEM((2 * nblk, 1, blk), jnp.float32),        # h ping-pong (h_k / h_{k+1})
        ],
        compiler_params=pltpu.CompilerParams(
            dimension_semantics=("arbitrary", "arbitrary", "arbitrary"),
            vmem_limit_bytes=_vmem_limit(n_a_buf * tile_bytes + fixed)),
        cost_estimate=pl.CostEstimate(
            flops=2 * K * n_pad * n_pad,
            transcendentals=0,
            bytes_accessed=K * n_pad * n_pad * 2 + 16 * n_pad),
    )(h0, ah0, a_tiles)
    return out.reshape(n_pad)[:N]


def appnp_score(x, w, b, a_prop, *, K, alpha):
    """Dispatch: keep bf16 A resident while it fits the generation's VMEM budget,
    otherwise stream it with the tiled kernel (N padded to a multiple of the tile)."""
    N = x.shape[0]
    resident_working = 2 * N * N + 12 * N
    if resident_working + (6 << 20) <= _scoped_vmem_cap():
        return appnp_score_resident(x, w, b, a_prop, K=K, alpha=alpha)
    return appnp_score_tiled(x, w, b, a_prop, K=K, alpha=alpha)


# ------------------------------- JAX glue ----------------------------------

def propagation_matrix(edge_index, num_nodes, alpha):
    """(1 - alpha) * A_hat^T with A_hat the GCN-normalized adjacency (self-loops added).

    Transpose + (1 - alpha) scaling are folded in here so the kernel's K-step loop is a
    bare mat-vec + add. Kept in f32; the score wrappers cast to bf16 only for the kernel.
    (Self-loops are added unconditionally, matching default APPNP/gcn_norm.)
    # TODO(synk): optional int8 A with per-tile scales on v5e/v6e (not portable to v7x).
    """
    src, dst = edge_index[0], edge_index[1]
    at = jnp.zeros((num_nodes, num_nodes), jnp.float32)
    at = at.at[src, dst].add(1.0)                 # A^T: row = source, col = destination
    at = at + jnp.eye(num_nodes, dtype=jnp.float32)
    deg = at.sum(axis=0)                          # row sums of A (= in-degree + 1)
    dinv = jnp.where(deg > 0.0, 1.0 / jnp.sqrt(deg), 0.0)
    return (1.0 - alpha) * (dinv[:, None] * at * dinv[None, :])


def filter_adj(edge_index, edge_attr, perm, num_nodes):
    """Keep edges whose endpoints are both in `perm`, remap node ids to new indices.
    # TODO(synk): output edge count is data-dependent; we return a fixed-size [2, E]
    # array with valid (remapped) edges packed first, padded with -1, plus num_edges.
    """
    k = perm.shape[0]
    keep = jnp.zeros((num_nodes,), bool).at[perm].set(True)
    remap = jnp.full((num_nodes,), -1, jnp.int32).at[perm].set(
        jnp.arange(k, dtype=jnp.int32))
    src, dst = edge_index[0], edge_index[1]
    emask = keep[src] & keep[dst]
    new_src = jnp.where(emask, remap[src], -1)
    new_dst = jnp.where(emask, remap[dst], -1)
    order = jnp.argsort(~emask, stable=True)      # valid edges first
    edge_index_new = jnp.stack([new_src[order], new_dst[order]]).astype(jnp.int32)
    edge_attr_new = None if edge_attr is None else jnp.where(
        emask[order][:, None] if edge_attr.ndim > 1 else emask[order],
        edge_attr[order], 0)
    num_edges = emask.sum()
    return edge_index_new, edge_attr_new, num_edges


def appnp_pool_forward(x, edge_index, w, b, *, ratio, K, alpha,
                       edge_attr=None, batch=None):
    N, C = x.shape
    if batch is None:
        batch = jnp.zeros((N,), jnp.int32)

    # score = APPNP(linear(x)) — Pallas kernel (lane-dense, bf16 A resident / tiled)
    a_prop = propagation_matrix(edge_index, N, alpha)
    score = appnp_score(x, w, b, a_prop, K=K, alpha=alpha)        # [N]

    # perm = topk(score, ratio, batch)  (single-graph batch here)
    k = int(math.ceil(ratio * N))
    _, perm = jax.lax.top_k(score, k)
    perm = perm.astype(jnp.int32)

    # x[perm] * tanh(score[perm]) — left to XLA so the gather fuses with tanh*mul.
    # TODO(synk): for very large graphs, fuse the gather into the score kernel via
    # PrefetchScalarGridSpec(num_scalar_prefetch=1) with perm in SMEM + pl.Element rows.
    x_out = x[perm] * jnp.tanh(score[perm])[:, None]

    batch_out = batch[perm]
    edge_index_out, edge_attr_out, num_edges = filter_adj(
        edge_index, edge_attr, perm, num_nodes=N)
    return x_out, edge_index_out, edge_attr_out, batch_out, perm, num_edges


# ------------------------------ pure-JAX reference ---------------------------

def appnp_score_colref(x, w, b, edge_index, *, K, alpha):
    """Column-vector f32 reference matching the original PyTorch module's math."""
    N = x.shape[0]
    src, dst = edge_index[0], edge_index[1]
    a = jnp.zeros((N, N), jnp.float32).at[dst, src].add(1.0) + jnp.eye(N, dtype=jnp.float32)
    deg = a.sum(axis=1)
    dinv = jnp.where(deg > 0.0, 1.0 / jnp.sqrt(deg), 0.0)
    a_hat = dinv[:, None] * a * dinv[None, :]
    h0 = x.astype(jnp.float32) @ w.astype(jnp.float32) + b.astype(jnp.float32)[None, :]
    h = h0
    for _ in range(K):
        h = (1.0 - alpha) * (a_hat @ h) + alpha * h0
    return h[:, 0]


# --------------------------------- main -------------------------------------

if __name__ == "__main__":
    RATIO, ALPHA = 0.5, 0.1
    # bf16 A (and per-step bf16 LHS cast) -> compare against the f32 reference loosely.
    ATOL = RTOL = 3e-2
    key = jax.random.PRNGKey(0)
    k1, k2, k3, k4, k5, k6 = jax.random.split(key, 6)

    # ---- 1) Full pooling forward at toy size (A-resident kernel path) ----
    N, C, K = 16, 8, 3
    x = jax.random.normal(k1, (N, C), jnp.float32)
    bound = 1.0 / math.sqrt(C)
    w = jax.random.uniform(k2, (C, 1), jnp.float32, -bound, bound)
    b = jax.random.uniform(k3, (1,), jnp.float32, -bound, bound)
    src = jnp.arange(N, dtype=jnp.int32)
    dst = (src + 1) % N
    edge_index = jnp.concatenate(
        [jnp.stack([src, dst]), jnp.stack([dst, src])], axis=1)   # undirected ring, [2, 2N]

    x_out, ei_out, ea_out, batch_out, perm, num_edges = appnp_pool_forward(
        x, edge_index, w, b, ratio=RATIO, K=K, alpha=ALPHA)
    jax.block_until_ready((x_out, ei_out, batch_out, perm, num_edges))
    kept = int(math.ceil(RATIO * N))
    assert x_out.shape == (kept, C)
    assert ei_out.shape == edge_index.shape

    score_ref = appnp_score_colref(x, w, b, edge_index, K=K, alpha=ALPHA)
    a_prop = propagation_matrix(edge_index, N, ALPHA)
    score_pl = appnp_score_resident(x, w, b, a_prop, K=K, alpha=ALPHA)
    assert jnp.allclose(score_pl, score_ref, atol=ATOL, rtol=RTOL), (
        float(jnp.max(jnp.abs(score_pl - score_ref))))

    # ---- 2) Tiled kernel: N=384 (3 full 128-blocks) and N=200 (padding path) ----
    for N2 in (384, 200):
        C2, K2 = 8, 4
        kk = jax.random.fold_in(k4, N2)
        x2 = jax.random.normal(kk, (N2, C2), jnp.float32)
        w2 = jax.random.uniform(k5, (C2, 1), jnp.float32, -bound, bound)
        b2 = jax.random.uniform(k6, (1,), jnp.float32, -bound, bound)
        s2 = jnp.arange(N2, dtype=jnp.int32)
        d2 = (s2 + 1) % N2
        edge_index2 = jnp.concatenate([jnp.stack([s2, d2]), jnp.stack([d2, s2])], axis=1)

        a_prop2 = propagation_matrix(edge_index2, N2, ALPHA)
        ref2 = appnp_score_colref(x2, w2, b2, edge_index2, K=K2, alpha=ALPHA)
        res2 = appnp_score_resident(x2, w2, b2, a_prop2, K=K2, alpha=ALPHA)
        til2 = appnp_score_tiled(x2, w2, b2, a_prop2, K=K2, alpha=ALPHA, blk=128)
        jax.block_until_ready((res2, til2))
        assert jnp.allclose(res2, ref2, atol=ATOL, rtol=RTOL), ("resident", N2)
        assert jnp.allclose(til2, ref2, atol=ATOL, rtol=RTOL), ("tiled", N2)

    print("KERNEL_OK")
</pallas_src>

<mosaic_0001>
module attributes {stable_mosaic.version = 11 : i64} {
  func.func @_score_resident_kernel(%arg0: memref<1x16xf32, #tpu.memory_space<vmem>>, %arg1: memref<16x16xbf16, #tpu.memory_space<vmem>>, %arg2: memref<1x16xf32, #tpu.memory_space<vmem>>) attributes {dimension_semantics = [], scalar_prefetch = 0 : i64, scratch_operands = 0 : i64, tpu.core_type = #tpu.core_type<tc>} {
    %c0 = arith.constant 0 : index
    %c0_0 = arith.constant 0 : index
    %0 = vector.load %arg0[%c0, %c0_0] : memref<1x16xf32, #tpu.memory_space<vmem>>, vector<1x16xf32>
    %c0_1 = arith.constant 0 : index
    %c0_2 = arith.constant 0 : index
    %1 = vector.load %arg1[%c0_1, %c0_2] : memref<16x16xbf16, #tpu.memory_space<vmem>>, vector<16x16xbf16>
    %cst = arith.constant 1.000000e-01 : f32
    %2 = vector.broadcast %cst : f32 to vector<1x16xf32>
    %3 = arith.mulf %2, %0 : vector<1x16xf32>
    %4 = arith.truncf %0 : vector<1x16xf32> to vector<1x16xbf16>
    %cst_3 = arith.constant dense<0.000000e+00> : vector<1x16xf32>
    %5 = tpu.matmul %4, %1, %cst_3 {dimension_numbers = #tpu.dot_dimension_numbers<[1], [0], [0], [1], [0, 0, 1, 1], [], []>} : vector<1x16xbf16>, vector<16x16xbf16>, vector<1x16xf32> -> vector<1x16xf32>
    %6 = arith.addf %5, %3 : vector<1x16xf32>
    %7 = arith.truncf %6 : vector<1x16xf32> to vector<1x16xbf16>
    %cst_4 = arith.constant dense<0.000000e+00> : vector<1x16xf32>
    %8 = tpu.matmul %7, %1, %cst_4 {dimension_numbers = #tpu.dot_dimension_numbers<[1], [0], [0], [1], [0, 0, 1, 1], [], []>} : vector<1x16xbf16>, vector<16x16xbf16>, vector<1x16xf32> -> vector<1x16xf32>
    %9 = arith.addf %8, %3 : vector<1x16xf32>
    %10 = arith.truncf %9 : vector<1x16xf32> to vector<1x16xbf16>
    %cst_5 = arith.constant dense<0.000000e+00> : vector<1x16xf32>
    %11 = tpu.matmul %10, %1, %cst_5 {dimension_numbers = #tpu.dot_dimension_numbers<[1], [0], [0], [1], [0, 0, 1, 1], [], []>} : vector<1x16xbf16>, vector<16x16xbf16>, vector<1x16xf32> -> vector<1x16xf32>
    %12 = arith.addf %11, %3 : vector<1x16xf32>
    %c0_6 = arith.constant 0 : index
    %c0_7 = arith.constant 0 : index
    %13 = vector.load %arg2[%c0_6, %c0_7] : memref<1x16xf32, #tpu.memory_space<vmem>>, vector<1x16xf32>
    tpu.vector_store %arg2[%c0_6, %c0_7], %12 {strides = array<i32>} : memref<1x16xf32, #tpu.memory_space<vmem>>, vector<1x16xf32>,
    return
  }
}

</mosaic_0001>

<llo_original>
// kernel: tpu_custom_call.1
$region0: #{tpu_custom_call.1}
  #allocation0 [shape = 'u32[]', space=smem, size = 0x4, offset = 0x4, fixed_abs, tag = 'smem constant byte address 0x4 - core index']
  #allocation1 [shape = 'u32[144,128]{1,0:T(1,128)}', space=vmem, size = 0x12000, scoped, tag = 'internal scratch']
  %s0 = inlined_call_operand.hbm [shape: f32[1,16], index: 0, kind: input, shape index: {}]
  %s1 = inlined_call_operand.hbm [shape: bf16[16,16], index: 1, kind: input, shape index: {}]
  %s2 = inlined_call_operand.hbm [shape: f32[1,16], index: 2, kind: output, shape index: {}]
  %s3 = sld [smem:[#allocation0]]
  $region26: #{tpu_custom_call.1} parent=0
    _
  %s5 = ssub.s32 1, %s3
  %s6 = scalar_select 0, %s5, %s3
  $region1: #{tpu_custom_call.1} parent=0
    #allocation2 [shape = 'u8[512]{0}', space=vmem, size = 0x400, scoped, tag = 'input window, operand 0, single buffered']
    #allocation3 [shape = 's32[1]{0}', space=sflag, size = 0x4, scoped, tag = 'scoped memory for tpu_custom_call.1']
    #allocation4 [shape = 's32[1]{0}', space=sflag, size = 0x4, scoped, tag = 'scoped memory for tpu_custom_call.1']
    #allocation5 [shape = 'u8[4096]{0}', space=vmem, size = 0x1000, scoped, tag = 'input window, operand 1, single buffered']
    #allocation6 [shape = 's32[1]{0}', space=sflag, size = 0x4, scoped, tag = 'scoped memory for tpu_custom_call.1']
    #allocation7 [shape = 'u8[512]{0}', space=vmem, size = 0x400, scoped, tag = 'output window, operand 0, single buffered']
    %7 = vsyncpa [#allocation3], 0
    %8 = vsyncpa [#allocation6], 0
    %9 = vsyncpa [#allocation4], 0
    // Predicated region
    $region2: #{tpu_custom_call.1} parent=1 // pred_check
      _
    $region3: #{tpu_custom_call.1} parent=1 // pred_check_branch
      %11 = sbr.rel (0) target = $region5
    $region4: #{tpu_custom_call.1} parent=1 // pred_region
      %s13 = ssub.s32 16, 16
      %14 = vsyncadd [#allocation3], %s13
      %s16 = sshll.u32 [#allocation2], 4
      %s17 = int_to_ptr.vmem [resolvable:$true] %s16
      %19 = dma.hbm_to_vmem [thread:$0]  %s0, 16, %s17, [#allocation3]
    $region5: #{tpu_custom_call.1} parent=1 // pred_fallthru
      _
    // Predicated region
    $region6: #{tpu_custom_call.1} parent=1 // pred_check
      _
    $region7: #{tpu_custom_call.1} parent=1 // pred_check_branch
      %21 = sbr.rel (0) target = $region9
    $region8: #{tpu_custom_call.1} parent=1 // pred_region
      %s23 = ssub.s32 128, 128
      %24 = vsyncadd [#allocation6], %s23
      %s25 = sshll.u32 [#allocation5], 4
      %s26 = int_to_ptr.vmem [resolvable:$true] %s25
      %31 = dma.hbm_to_vmem [thread:$0]  %s1, 128, %s26, [#allocation6], 64, 64, 4
    $region9: #{tpu_custom_call.1} parent=1 // pred_fallthru
      _
    // Predicated region
    $region10: #{tpu_custom_call.1} parent=1 // pred_check
      _
    $region11: #{tpu_custom_call.1} parent=1 // pred_check_branch
      %33 = sbr.rel (0) target = $region13
    $region12: #{tpu_custom_call.1} parent=1 // pred_region
      %34 = dma.done [#allocation3], 16
    $region13: #{tpu_custom_call.1} parent=1 // pred_fallthru
      _
    // Predicated region
    $region14: #{tpu_custom_call.1} parent=1 // pred_check
      _
    $region15: #{tpu_custom_call.1} parent=1 // pred_check_branch
      %36 = sbr.rel (0) target = $region17
    $region16: #{tpu_custom_call.1} parent=1 // pred_region
      %37 = dma.done [#allocation6], 128
    $region17: #{tpu_custom_call.1} parent=1 // pred_fallthru
      _
    %v39 = vld [vmem:[#allocation2] sm:$0x1]
    %v40 = vld [vmem:[#allocation5] sm:$0xf]
    %v41 = vld [vmem:[#allocation5 + $0x4] sm:$0xf]
    %v42 = vmul.f32 %v39, 0.1
    %v43 = vpack.c.bf16 %v39, %v39
    %v46 = vunpack.c.l.b16 %v40
    %v47 = vunpack.c.l.b16 %v41
    %v48 = vpack.c.b16 %v47, %v46
    %vm50 = vcmask 130048
    %v52 = vsel %vm50, %v43, 0
    %54 = vmatprep.subr.bf16.mxu0 0
    %55 = vmatpush1.bf16.msra.mxu0 0
    %56 = vmatprep.subr.bf16.mxu0 0
    %57 = vmatpush1.bf16.msra.mxu0 0
    %58 = vmatprep.subr.bf16.mxu0 0
    %59 = vmatpush1.bf16.msra.mxu0 0
    %60 = vmatprep.subr.bf16.mxu0 0
    %61 = vmatpush1.bf16.msra.mxu0 0
    %62 = vmatprep.subr.bf16.mxu0 0
    %63 = vmatpush1.bf16.msra.mxu0 0
    %64 = vmatprep.subr.bf16.mxu0 0
    %65 = vmatpush1.bf16.msra.mxu0 0
    %66 = vmatprep.subr.bf16.mxu0 0
    %67 = vmatpush1.bf16.msra.mxu0 0
    %68 = vmatprep.subr.bf16.mxu0 0
    %69 = vmatpush1.bf16.msra.mxu0 %v48
    %70 = vmatprep.subr.bf16.mxu0 0
    %71 = vmatpush2.bf16.msra.mxu0 0
    %72 = vmatprep.subr.bf16.mxu0 0
    %73 = vmatpush2.bf16.msra.mxu0 0
    %74 = vmatprep.subr.bf16.mxu0 0
    %75 = vmatpush2.bf16.msra.mxu0 0
    %76 = vmatprep.subr.bf16.mxu0 0
    %77 = vmatpush2.bf16.msra.mxu0 0
    %78 = vmatprep.subr.bf16.mxu0 0
    %79 = vmatpush2.bf16.msra.mxu0 0
    %80 = vmatprep.subr.bf16.mxu0 0
    %81 = vmatpush2.bf16.msra.mxu0 0
    %82 = vmatprep.subr.bf16.mxu0 0
    %83 = vmatpush2.bf16.msra.mxu0 0
    %84 = vmatprep.subr.bf16.mxu0 0
    %85 = vmatpush2.bf16.msra.mxu0 0
    %86 = vmatprep.mubr.bf16.mxu0 0
    %87 = vmatmul.mubr.bf16.gmra.mxu0 %v52
    %v88 = vpop.f32.mrf.mxu0
    %v89 = vadd.f32 %v42, %v88
    %v90 = vpop.f32.mrf.mxu0
    %v91 = vpop.f32.mrf.mxu0
    %v92 = vpop.f32.mrf.mxu0
    %93 = vdwg.mxu0
    %v94 = vpack.c.bf16 %v89, %v89
    %v96 = vsel %vm50, %v94, 0
    %98 = vmatprep.subr.bf16.mxu0 0
    %99 = vmatpush1.bf16.msra.mxu0 0
    %100 = vmatprep.subr.bf16.mxu0 0
    %101 = vmatpush1.bf16.msra.mxu0 0
    %102 = vmatprep.subr.bf16.mxu0 0
    %103 = vmatpush1.bf16.msra.mxu0 0
    %104 = vmatprep.subr.bf16.mxu0 0
    %105 = vmatpush1.bf16.msra.mxu0 0
    %106 = vmatprep.subr.bf16.mxu0 0
    %107 = vmatpush1.bf16.msra.mxu0 0
    %108 = vmatprep.subr.bf16.mxu0 0
    %109 = vmatpush1.bf16.msra.mxu0 0
    %110 = vmatprep.subr.bf16.mxu0 0
    %111 = vmatpush1.bf16.msra.mxu0 0
    %112 = vmatprep.subr.bf16.mxu0 0
    %113 = vmatpush1.bf16.msra.mxu0 %v48
    %114 = vmatprep.subr.bf16.mxu0 0
    %115 = vmatpush2.bf16.msra.mxu0 0
    %116 = vmatprep.subr.bf16.mxu0 0
    %117 = vmatpush2.bf16.msra.mxu0 0
    %118 = vmatprep.subr.bf16.mxu0 0
    %119 = vmatpush2.bf16.msra.mxu0 0
    %120 = vmatprep.subr.bf16.mxu0 0
    %121 = vmatpush2.bf16.msra.mxu0 0
    %122 = vmatprep.subr.bf16.mxu0 0
    %123 = vmatpush2.bf16.msra.mxu0 0
    %124 = vmatprep.subr.bf16.mxu0 0
    %125 = vmatpush2.bf16.msra.mxu0 0
    %126 = vmatprep.subr.bf16.mxu0 0
    %127 = vmatpush2.bf16.msra.mxu0 0
    %128 = vmatprep.subr.bf16.mxu0 0
    %129 = vmatpush2.bf16.msra.mxu0 0
    %130 = vmatprep.mubr.bf16.mxu0 0
    %131 = vmatmul.mubr.bf16.gmra.mxu0 %v96
    %v132 = vpop.f32.mrf.mxu0
    %v133 = vadd.f32 %v42, %v132
    %v134 = vpop.f32.mrf.mxu0
    %v135 = vpop.f32.mrf.mxu0
    %v136 = vpop.f32.mrf.mxu0
    %137 = vdwg.mxu0
    %v138 = vpack.c.bf16 %v133, %v133
    %v140 = vsel %vm50, %v138, 0
    %142 = vmatprep.subr.bf16.mxu0 0
    %143 = vmatpush1.bf16.msra.mxu0 0
    %144 = vmatprep.subr.bf16.mxu0 0
    %145 = vmatpush1.bf16.msra.mxu0 0
    %146 = vmatprep.subr.bf16.mxu0 0
    %147 = vmatpush1.bf16.msra.mxu0 0
    %148 = vmatprep.subr.bf16.mxu0 0
    %149 = vmatpush1.bf16.msra.mxu0 0
    %150 = vmatprep.subr.bf16.mxu0 0
    %151 = vmatpush1.bf16.msra.mxu0 0
    %152 = vmatprep.subr.bf16.mxu0 0
    %153 = vmatpush1.bf16.msra.mxu0 0
    %154 = vmatprep.subr.bf16.mxu0 0
    %155 = vmatpush1.bf16.msra.mxu0 0
    %156 = vmatprep.subr.bf16.mxu0 0
    %157 = vmatpush1.bf16.msra.mxu0 %v48
    %158 = vmatprep.subr.bf16.mxu0 0
    %159 = vmatpush2.bf16.msra.mxu0 0
    %160 = vmatprep.subr.bf16.mxu0 0
    %161 = vmatpush2.bf16.msra.mxu0 0
    %162 = vmatprep.subr.bf16.mxu0 0
    %163 = vmatpush2.bf16.msra.mxu0 0
    %164 = vmatprep.subr.bf16.mxu0 0
    %165 = vmatpush2.bf16.msra.mxu0 0
    %166 = vmatprep.subr.bf16.mxu0 0
    %167 = vmatpush2.bf16.msra.mxu0 0
    %168 = vmatprep.subr.bf16.mxu0 0
    %169 = vmatpush2.bf16.msra.mxu0 0
    %170 = vmatprep.subr.bf16.mxu0 0
    %171 = vmatpush2.bf16.msra.mxu0 0
    %172 = vmatprep.subr.bf16.mxu0 0
    %173 = vmatpush2.bf16.msra.mxu0 0
    %174 = vmatprep.mubr.bf16.mxu0 0
    %175 = vmatmul.mubr.bf16.gmra.mxu0 %v140
    %v176 = vpop.f32.mrf.mxu0
    %v177 = vadd.f32 %v42, %v176
    %v178 = vpop.f32.mrf.mxu0
    %v179 = vpop.f32.mrf.mxu0
    %v180 = vpop.f32.mrf.mxu0
    %181 = vdwg.mxu0
    %vm182 = vcmask 122880
    %183 = vst.msk [vmem:[#allocation7] sm:$0x1] %vm182, %v177
    // Predicated region
    $region18: #{tpu_custom_call.1} parent=1 // pred_check
      _
    $region19: #{tpu_custom_call.1} parent=1 // pred_check_branch
      %185 = sbr.rel (0) target = $region21
    $region20: #{tpu_custom_call.1} parent=1 // pred_region
      %s187 = ssub.s32 16, 16
      %188 = vsyncadd [#allocation4], %s187
      %s190 = sshll.u32 [#allocation7], 4
      %s191 = int_to_ptr.vmem [resolvable:$true] %s190
      %193 = dma.vmem_to_hbm [thread:$0]  %s191, 16, %s2, [#allocation4]
    $region21: #{tpu_custom_call.1} parent=1 // pred_fallthru
      _
    // Predicated region
    $region22: #{tpu_custom_call.1} parent=1 // pred_check
      _
    $region23: #{tpu_custom_call.1} parent=1 // pred_check_branch
      %195 = sbr.rel (0) target = $region25
    $region24: #{tpu_custom_call.1} parent=1 // pred_region
      %196 = dma.done [#allocation4], 16
    $region25: #{tpu_custom_call.1} parent=1 // pred_fallthru
      _
    %197 = vsyncpa [#allocation3], 1
    %198 = vsyncpa [#allocation6], 1
    %199 = vsyncpa [#allocation4], 1

</llo_original>
